<compile_context>
chip_gen: v5e
topology: v5e:2x2
jax: 0.10.0
libtpu: 0.0.40
codegen_flags: <defaults>
</compile_context>

<pallas_src>
import jax
import jax.numpy as jnp
from jax.experimental import pallas as pl
from jax.experimental.pallas import tpu as pltpu

_MIB = 1024 * 1024


def ffn_kernel(x_ref, w1_ref, b1_ref, w2_ref, b2_ref, o_ref):
    # x_ref : (1, C, TT)  tokens on lanes, channels on sublanes
    # w1_ref: (E, C) bf16 (BN1 scale pre-folded),  b1_ref: (E, 1) f32
    # w2_ref: (C, E) bf16 (BN2 scale pre-folded),  b2_ref: (C, 1) f32
    x = x_ref[0].astype(w1_ref.dtype)                                   # (C, TT)

    # pw1 + BN1 (scale folded into w1) + ReLU, f32 accumulate on the MXU.
    h = jnp.dot(w1_ref[...], x, preferred_element_type=jnp.float32)     # (E, TT)
    h = jnp.maximum(h + b1_ref[...], 0.0)

    # pw2 + BN2 (scale folded into w2).
    y = jnp.dot(w2_ref[...], h.astype(w2_ref.dtype),
                preferred_element_type=jnp.float32)                     # (C, TT)
    o_ref[0] = (y + b2_ref[...]).astype(o_ref.dtype)


def _round_up(x, m):
    return ((x + m - 1) // m) * m


def _tpu_vmem_capacity_bytes():
    """Physical VMEM of the attached TPU (conservative 64 MiB fallback)."""
    try:
        cap = int(pltpu.get_tpu_info().vmem_capacity_bytes)
        if cap > 0:
            return cap
    except Exception:
        pass
    return 64 * _MIB


def _pick_token_tile(hw_pad, max_tile, c, e, in_bytes, out_bytes, budget):
    """Largest multiple-of-128 divisor of hw_pad (<= max_tile) that fits budget."""

    def fits(tt):
        est = (2 * c * tt * in_bytes       # x tile, double-buffered
               + 2 * c * tt * out_bytes    # out tile, double-buffered
               + 2 * c * tt                # bf16 cast of x
               + 4 * e * tt                # f32 intermediate h
               + 2 * e * tt                # bf16 cast of h
               + 4 * c * tt                # f32 y before the output cast
               + 2 * 2 * (e * c + c * e)   # bf16 weights (double-buffered bound)
               + 2 * 4 * (e + c))          # f32 bias columns
        return est <= budget

    best = 128                              # always a legal, tiny fallback
    t = 128
    top = min(max_tile, hw_pad)
    while t <= top:
        if hw_pad % t == 0 and fits(t):
            best = t
        t += 128
    return best


def ffn_pallas(x_nchw, params, *, eps=1e-5, compute_dtype=jnp.bfloat16,
               max_token_tile=None, vmem_limit_bytes=None):
    (w1, g1, be1, m1, v1, w2, g2, be2, m2, v2) = params
    N, C, H, W = x_nchw.shape
    E = w1.shape[0]  # embed_dim
    HW = H * W

    # ---- generation-aware VMEM budgets / tile ceiling ----
    cap = _tpu_vmem_capacity_bytes()
    pipe_budget = cap // 2                       # ~64 MiB on v5e/v6e, ~32 MiB on v7x
    if vmem_limit_bytes is None:
        vmem_limit_bytes = (3 * cap) // 4        # 96 MiB / 48 MiB, Mosaic headroom
    if max_token_tile is None:
        max_token_tile = 4096 if cap >= 96 * _MIB else 2048

    # ---- fold BatchNorm (inference) into conv weights + bias columns (f32) ----
    s1 = (g1 / jnp.sqrt(v1 + eps)).astype(jnp.float32)
    b1 = (be1 - m1 * s1).astype(jnp.float32)
    s2 = (g2 / jnp.sqrt(v2 + eps)).astype(jnp.float32)
    b2 = (be2 - m2 * s2).astype(jnp.float32)
    # Fold the scale in f32, then cast once to the MXU compute dtype.
    w1_mat = (w1[:, :, 0, 0].astype(jnp.float32) * s1[:, None]).astype(compute_dtype)  # (E, C)
    w2_mat = (w2[:, :, 0, 0].astype(jnp.float32) * s2[:, None]).astype(compute_dtype)  # (C, E)

    # ---- NCHW -> (N, C, HW); pad token axis to a multiple of 128 (lane-dense) ----
    x = x_nchw.reshape(N, C, HW)
    HW_pad = _round_up(HW, 128)
    if HW_pad != HW:
        x = jnp.pad(x, ((0, 0), (0, 0), (0, HW_pad - HW)))

    in_bytes = jnp.dtype(x.dtype).itemsize
    out_bytes = in_bytes

    # v7x megacore: guarantee >= 2 parallel grid steps when N == 1.
    if N == 1 and HW_pad >= 256:
        max_token_tile = min(max_token_tile, HW_pad // 2)

    tt = _pick_token_tile(HW_pad, max_token_tile, C, E, in_bytes, out_bytes, pipe_budget)
    grid = (N, HW_pad // tt)

    cost = pl.CostEstimate(
        flops=4 * N * HW_pad * C * E,            # two matmuls: 2*(C*E) MACs per token
        transcendentals=0,
        bytes_accessed=(N * C * HW_pad * (in_bytes + out_bytes)
                        + 2 * E * C * jnp.dtype(compute_dtype).itemsize),
    )

    # Note: the weight/bias BlockSpecs have constant index maps, so Pallas only
    # fetches them once; pipeline_mode=pl.Buffered(1) could shave their second
    # buffer for large SHViT dims but is left at the default for robustness.
    out = pl.pallas_call(
        ffn_kernel,
        out_shape=jax.ShapeDtypeStruct((N, C, HW_pad), x.dtype),
        grid_spec=pltpu.PrefetchScalarGridSpec(
            num_scalar_prefetch=0,
            grid=grid,
            in_specs=[
                pl.BlockSpec((1, C, tt), lambda n, j: (n, 0, j)),   # x tile
                pl.BlockSpec((E, C), lambda n, j: (0, 0)),          # w1 * s1
                pl.BlockSpec((E, 1), lambda n, j: (0, 0)),          # b1
                pl.BlockSpec((C, E), lambda n, j: (0, 0)),          # w2 * s2
                pl.BlockSpec((C, 1), lambda n, j: (0, 0)),          # b2
            ],
            out_specs=pl.BlockSpec((1, C, tt), lambda n, j: (n, 0, j)),
        ),
        compiler_params=pltpu.CompilerParams(
            dimension_semantics=("parallel", "parallel"),
            vmem_limit_bytes=int(vmem_limit_bytes),
        ),
        cost_estimate=cost,
    )(x, w1_mat, b1[:, None], w2_mat, b2[:, None])

    if HW_pad != HW:
        out = out[:, :, :HW]
    return out.reshape(N, C, H, W)


def ffn_reference(x_nchw, params, *, eps=1e-5):
    """Pure-JAX f32 reference of the same inference-mode forward pass."""
    (w1, g1, be1, m1, v1, w2, g2, be2, m2, v2) = params
    N, C, H, W = x_nchw.shape
    x = jnp.transpose(x_nchw, (0, 2, 3, 1)).reshape(-1, C)

    s1 = g1 / jnp.sqrt(v1 + eps)
    b1 = be1 - m1 * s1
    s2 = g2 / jnp.sqrt(v2 + eps)
    b2 = be2 - m2 * s2

    h = x @ w1[:, :, 0, 0].T
    h = jnp.maximum(h * s1 + b1, 0.0)
    y = h @ w2[:, :, 0, 0].T
    y = y * s2 + b2
    return jnp.transpose(y.reshape(N, H, W, C), (0, 3, 1, 2))


def init_params(key, dim, embed_dim):
    ks = jax.random.split(key, 8)
    # Conv weights: (out, in, 1, 1), no bias.
    w1 = jax.random.normal(ks[0], (embed_dim, dim, 1, 1), jnp.float32) * 0.1
    w2 = jax.random.normal(ks[1], (dim, embed_dim, 1, 1), jnp.float32) * 0.1
    # BN params / running stats (non-trivial values so the kernel does real work;
    # the module __init__ would set gamma1=1, gamma2=0, beta=0, mean=0, var=1).
    g1 = 1.0 + 0.1 * jax.random.normal(ks[2], (embed_dim,), jnp.float32)
    be1 = 0.1 * jax.random.normal(ks[3], (embed_dim,), jnp.float32)
    m1 = 0.1 * jax.random.normal(ks[4], (embed_dim,), jnp.float32)
    v1 = jnp.abs(jax.random.normal(ks[5], (embed_dim,), jnp.float32)) + 0.5

    g2 = 0.1 * jax.random.normal(ks[6], (dim,), jnp.float32)  # bn_weight_init=0 (+ perturb)
    be2 = jnp.zeros((dim,), jnp.float32)
    m2 = 0.1 * jax.random.normal(ks[7], (dim,), jnp.float32)
    v2 = jnp.ones((dim,), jnp.float32)
    return (w1, g1, be1, m1, v1, w2, g2, be2, m2, v2)


if __name__ == "__main__":
    key = jax.random.PRNGKey(0)
    k_x, k_p, k_x2 = jax.random.split(key, 3)

    N, dim, H, W = 2, 4, 16, 16
    embed_dim = 32

    x = jax.random.normal(k_x, (N, dim, H, W), jnp.float32)
    params = init_params(k_p, dim, embed_dim)

    out = jax.block_until_ready(ffn_pallas(x, params))
    ref = ffn_reference(x, params)
    assert out.shape == (N, dim, H, W)
    # bf16 matmul operands with f32 accumulation -> loosened tolerance vs f32 ref.
    assert jnp.allclose(out, ref, atol=2e-2, rtol=2e-2), "mismatch vs reference"

    # Non-128-multiple token count (e.g. a 14x14 SHViT stage) exercises the
    # lane-padding path and the N==1 megacore split.
    x2 = jax.random.normal(k_x2, (1, dim, 14, 14), jnp.float32)
    out2 = jax.block_until_ready(ffn_pallas(x2, params))
    ref2 = ffn_reference(x2, params)
    assert out2.shape == (1, dim, 14, 14)
    assert jnp.allclose(out2, ref2, atol=2e-2, rtol=2e-2), "mismatch vs reference (padded)"

    print("KERNEL_OK")
</pallas_src>

<mosaic_0001>
module attributes {stable_mosaic.version = 11 : i64} {
  func.func @ffn_kernel(%arg0: i32, %arg1: i32, %arg2: memref<1x4x256xf32, #tpu.memory_space<vmem>>, %arg3: memref<32x4xbf16, #tpu.memory_space<vmem>>, %arg4: memref<32x1xf32, #tpu.memory_space<vmem>>, %arg5: memref<4x32xbf16, #tpu.memory_space<vmem>>, %arg6: memref<4x1xf32, #tpu.memory_space<vmem>>, %arg7: memref<1x4x256xf32, #tpu.memory_space<vmem>>) attributes {dimension_semantics = [#tpu.dimension_semantics<parallel>, #tpu.dimension_semantics<parallel>], iteration_bounds = array<i64: 2, 1>, scalar_prefetch = 0 : i64, scratch_operands = 0 : i64, tpu.core_type = #tpu.core_type<tc>, window_params = [{transform_indices = @transform_0, window_bounds = array<i64: 1, 4, 256>}, {pipeline_mode = #tpu.pipeline_mode<synchronous>, transform_indices = @transform_1, window_bounds = array<i64: 32, 4>}, {pipeline_mode = #tpu.pipeline_mode<synchronous>, transform_indices = @transform_2, window_bounds = array<i64: 32, 1>}, {pipeline_mode = #tpu.pipeline_mode<synchronous>, transform_indices = @transform_3, window_bounds = array<i64: 4, 32>}, {pipeline_mode = #tpu.pipeline_mode<synchronous>, transform_indices = @transform_4, window_bounds = array<i64: 4, 1>}, {transform_indices = @transform_5, window_bounds = array<i64: 1, 4, 256>}]} {
    %c0 = arith.constant 0 : index
    %c0_0 = arith.constant 0 : index
    %c0_1 = arith.constant 0 : index
    %0 = vector.load %arg2[%c0, %c0_0, %c0_1] : memref<1x4x256xf32, #tpu.memory_space<vmem>>, vector<1x4x256xf32>
    %1 = vector.shape_cast %0 : vector<1x4x256xf32> to vector<4x256xf32>
    %2 = arith.truncf %1 : vector<4x256xf32> to vector<4x256xbf16>
    %c0_2 = arith.constant 0 : index
    %c0_3 = arith.constant 0 : index
    %3 = vector.load %arg3[%c0_2, %c0_3] : memref<32x4xbf16, #tpu.memory_space<vmem>>, vector<32x4xbf16>
    %cst = arith.constant dense<0.000000e+00> : vector<32x256xf32>
    %4 = tpu.matmul %3, %2, %cst {dimension_numbers = #tpu.dot_dimension_numbers<[1], [0], [0], [1], [0, 0, 1, 1], [], []>} : vector<32x4xbf16>, vector<4x256xbf16>, vector<32x256xf32> -> vector<32x256xf32>
    %c0_4 = arith.constant 0 : index
    %c0_5 = arith.constant 0 : index
    %5 = vector.load %arg4[%c0_4, %c0_5] : memref<32x1xf32, #tpu.memory_space<vmem>>, vector<32x1xf32>
    %6 = vector.broadcast %5 : vector<32x1xf32> to vector<32x256xf32>
    %7 = arith.addf %4, %6 : vector<32x256xf32>
    %cst_6 = arith.constant 0.000000e+00 : f32
    %8 = vector.broadcast %cst_6 : f32 to vector<32x256xf32>
    %9 = arith.maximumf %7, %8 : vector<32x256xf32>
    %c0_7 = arith.constant 0 : index
    %c0_8 = arith.constant 0 : index
    %10 = vector.load %arg5[%c0_7, %c0_8] : memref<4x32xbf16, #tpu.memory_space<vmem>>, vector<4x32xbf16>
    %11 = arith.truncf %9 : vector<32x256xf32> to vector<32x256xbf16>
    %cst_9 = arith.constant dense<0.000000e+00> : vector<4x256xf32>
    %12 = tpu.matmul %10, %11, %cst_9 {dimension_numbers = #tpu.dot_dimension_numbers<[1], [0], [0], [1], [0, 0, 1, 1], [], []>} : vector<4x32xbf16>, vector<32x256xbf16>, vector<4x256xf32> -> vector<4x256xf32>
    %c0_10 = arith.constant 0 : index
    %c0_11 = arith.constant 0 : index
    %13 = vector.load %arg6[%c0_10, %c0_11] : memref<4x1xf32, #tpu.memory_space<vmem>>, vector<4x1xf32>
    %14 = vector.broadcast %13 : vector<4x1xf32> to vector<4x256xf32>
    %15 = arith.addf %12, %14 : vector<4x256xf32>
    %c0_12 = arith.constant 0 : index
    %c0_13 = arith.constant 0 : index
    %c0_14 = arith.constant 0 : index
    %16 = vector.load %arg7[%c0_12, %c0_13, %c0_14] : memref<1x4x256xf32, #tpu.memory_space<vmem>>, vector<1x4x256xf32>
    %17 = vector.shape_cast %16 : vector<1x4x256xf32> to vector<4x256xf32>
    %18 = vector.shape_cast %15 : vector<4x256xf32> to vector<1x4x256xf32>
    tpu.vector_store %arg7[%c0_12, %c0_13, %c0_14], %18 {strides = array<i32>} : memref<1x4x256xf32, #tpu.memory_space<vmem>>, vector<1x4x256xf32>,
    return
  }
  func.func @transform_0(%arg0: i32, %arg1: i32) -> (i32, i32, i32) {
    %c0_i32 = arith.constant 0 : i32
    %c0_i32_0 = arith.constant 0 : i32
    return %arg0, %c0_i32, %arg1 : i32, i32, i32
  }
  func.func @transform_1(%arg0: i32, %arg1: i32) -> (i32, i32) {
    %c0_i32 = arith.constant 0 : i32
    %c0_i32_0 = arith.constant 0 : i32
    %c0_i32_1 = arith.constant 0 : i32
    return %c0_i32, %c0_i32_0 : i32, i32
  }
  func.func @transform_2(%arg0: i32, %arg1: i32) -> (i32, i32) {
    %c0_i32 = arith.constant 0 : i32
    %c0_i32_0 = arith.constant 0 : i32
    %c0_i32_1 = arith.constant 0 : i32
    return %c0_i32, %c0_i32_0 : i32, i32
  }
  func.func @transform_3(%arg0: i32, %arg1: i32) -> (i32, i32) {
    %c0_i32 = arith.constant 0 : i32
    %c0_i32_0 = arith.constant 0 : i32
    %c0_i32_1 = arith.constant 0 : i32
    return %c0_i32, %c0_i32_0 : i32, i32
  }
  func.func @transform_4(%arg0: i32, %arg1: i32) -> (i32, i32) {
    %c0_i32 = arith.constant 0 : i32
    %c0_i32_0 = arith.constant 0 : i32
    %c0_i32_1 = arith.constant 0 : i32
    return %c0_i32, %c0_i32_0 : i32, i32
  }
  func.func @transform_5(%arg0: i32, %arg1: i32) -> (i32, i32, i32) {
    %c0_i32 = arith.constant 0 : i32
    %c0_i32_0 = arith.constant 0 : i32
    return %arg0, %c0_i32, %arg1 : i32, i32, i32
  }
}

</mosaic_0001>

<llo_original>
// kernel: tpu_custom_call.1
$region0: #{tpu_custom_call.1}
  #allocation0 [shape = 'u32[]', space=smem, size = 0x4, offset = 0x4, fixed_abs, tag = 'smem constant byte address 0x4 - core index']
  #allocation1 [shape = 'u32[72,128]{1,0:T(1,128)}', space=vmem, size = 0x9000, scoped, tag = 'internal scratch']
  %s0 = inlined_call_operand.vmem [shape: f32[2,4,256], index: 0, kind: input, shape index: {}]
  %s1 = inlined_call_operand.vmem [shape: bf16[32,4], index: 1, kind: input, shape index: {}]
  %s2 = inlined_call_operand.vmem [shape: f32[32,1], index: 2, kind: input, shape index: {}]
  %s3 = inlined_call_operand.vmem [shape: bf16[4,32], index: 3, kind: input, shape index: {}]
  %s4 = inlined_call_operand.vmem [shape: f32[4,1], index: 4, kind: input, shape index: {}]
  %s5 = inlined_call_operand.hbm [shape: f32[2,4,256], index: 5, kind: output, shape index: {}]
  %s6 = sld [smem:[#allocation0]]
  $region53: #{tpu_custom_call.1} parent=0
    _
  %s8 = ssub.s32 1, %s6
  %s9 = scalar_select 0, %s8, %s6
  $region1: #{tpu_custom_call.1} parent=0
    #allocation2 [shape = 'u8[8192]{0}', space=vmem, size = 0x2000, scoped, tag = 'output window, operand 0']
    #allocation3 [shape = 's32[2]{0}', space=sflag, size = 0x8, scoped, tag = 'scoped memory for tpu_custom_call.1']
    %10 = vsyncpa [#allocation3], 0
    %s11 = scalar_lea.sflag [#allocation3], 1
    %12 = vsyncpa %s11, 0
    loop: start=0, step=1, limit=4
    $region2: #{tpu_custom_call.1} parent=1 // loop_pre_header
      _
    $region3: #{tpu_custom_call.1} parent=1 // loop_header
      %s14 = sphi 0, %s18
      %p15 = scmp.ge.s32.totalorder %s14, 4
      %s21 = sphi 0, %s33
      %s22 = sphi 0, %s29
      %s23 = sphi 0, %s21
      %s24 = sphi 0, %s22
      %s25 = sphi 0, %s23
      %s26 = sphi 0, %s24
      %s38 = sphi 0, %s40
      %s41 = sphi 0, %s38
      %s42 = sphi 0, %s41
      %s58 = sphi 0, %s42
      %s62 = sphi 0, %s62
      %s64 = sphi 0, %s62
      %s65 = sphi 0, %s64
      %s79 = sphi 0, %s65
      %s83 = sphi 0, %s83
      %s85 = sphi 0, %s83
      %s86 = sphi 0, %s85
      %s100 = sphi 0, %s86
      %s104 = sphi 0, %s104
      %s106 = sphi 0, %s104
      %s107 = sphi 0, %s106
      %s121 = sphi 0, %s107
      %s125 = sphi 0, %s125
      %s127 = sphi 0, %s125
      %s128 = sphi 0, %s127
      %s142 = sphi 0, %s128
      %s150 = sphi 0, %s152
      %s153 = sphi 0, %s150
      %s154 = sphi 0, %s153
      %s170 = sphi 0, %s154
    $region4: #{tpu_custom_call.1} parent=1 // loop_header_branch
      %17 = sbr.rel (%p15) target = $region8
    $region5: #{tpu_custom_call.1} parent=1 // loop_body
      %s19 = ssub.s32 %s14, 1
      %s20 = ssub.s32 %s14, 2
      %s27 = sadd.s32 1, %s22
      %p28 = scmp.ge.s32.totalorder %s27, 1
      %s29 = scalar_select %p28, 0, %s27
      %s30 = sadd.s32 1, %s21
      %s31 = scalar_select %p28, %s30, %s21
      %p32 = scmp.ge.s32.totalorder %s31, 2
      %s33 = scalar_select %p32, 0, %s31
      %s34 = ssub.s32 %s21, %s33
      %s35 = ssub.s32 %s22, %s29
      %s36 = sor.u32 %s34, %s35
      %p37 = scmp.eq.s32.totalorder %s36, 0
      %s39 = sadd.s32 %s38, 1
      %s40 = scalar_select %p37, %s38, %s39
      %p43 = pneg %p37
      %p44 = scmp.eq.s32.totalorder %s14, 1
      %p45 = por %p43, %p44
      %p46 = scmp.ne.s32.totalorder %s38, %s41
      %p47 = scmp.eq.s32.totalorder %s14, 0
      %p48 = por %p46, %p47
      %p49 = scmp.ne.s32.totalorder %s38, %s41
      %p50 = scmp.eq.s32.totalorder %s19, 1
      %p51 = por %p49, %p50
      %p52 = scmp.ne.s32.totalorder %s41, %s42
      %p53 = scmp.eq.s32.totalorder %s19, 0
      %p54 = por %p52, %p53
      %p55 = scmp.ne.s32.totalorder %s41, %s42
      %p56 = scmp.eq.s32.totalorder %s20, 1
      %p57 = por %p55, %p56
      %p59 = scmp.ne.s32.totalorder %s42, %s58
      %p60 = scmp.eq.s32.totalorder %s20, 0
      %p61 = por %p59, %p60
      %s63 = sadd.s32 %s62, 1
      %p66 = scmp.eq.s32.totalorder %s14, 1
      %p67 = scmp.ne.s32.totalorder %s62, %s64
      %p68 = scmp.eq.s32.totalorder %s14, 0
      %p69 = por %p67, %p68
      %p70 = scmp.ne.s32.totalorder %s62, %s64
      %p71 = scmp.eq.s32.totalorder %s19, 1
      %p72 = por %p70, %p71
      %p73 = scmp.ne.s32.totalorder %s64, %s65
      %p74 = scmp.eq.s32.totalorder %s19, 0
      %p75 = por %p73, %p74
      %p76 = scmp.ne.s32.totalorder %s64, %s65
      %p77 = scmp.eq.s32.totalorder %s20, 1
      %p78 = por %p76, %p77
      %p80 = scmp.ne.s32.totalorder %s65, %s79
      %p81 = scmp.eq.s32.totalorder %s20, 0
      %p82 = por %p80, %p81
      %s84 = sadd.s32 %s83, 1
      %p87 = scmp.eq.s32.totalorder %s14, 1
      %p88 = scmp.ne.s32.totalorder %s83, %s85
      %p89 = scmp.eq.s32.totalorder %s14, 0
      %p90 = por %p88, %p89
      %p91 = scmp.ne.s32.totalorder %s83, %s85
      %p92 = scmp.eq.s32.totalorder %s19, 1
      %p93 = por %p91, %p92
      %p94 = scmp.ne.s32.totalorder %s85, %s86
      %p95 = scmp.eq.s32.totalorder %s19, 0
      %p96 = por %p94, %p95
      %p97 = scmp.ne.s32.totalorder %s85, %s86
      %p98 = scmp.eq.s32.totalorder %s20, 1
      %p99 = por %p97, %p98
      %p101 = scmp.ne.s32.totalorder %s86, %s100
      %p102 = scmp.eq.s32.totalorder %s20, 0
      %p103 = por %p101, %p102
      %s105 = sadd.s32 %s104, 1
      %p108 = scmp.eq.s32.totalorder %s14, 1
      %p109 = scmp.ne.s32.totalorder %s104, %s106
      %p110 = scmp.eq.s32.totalorder %s14, 0
      %p111 = por %p109, %p110
      %p112 = scmp.ne.s32.totalorder %s104, %s106
      %p113 = scmp.eq.s32.totalorder %s19, 1
      %p114 = por %p112, %p113
      %p115 = scmp.ne.s32.totalorder %s106, %s107
      %p116 = scmp.eq.s32.totalorder %s19, 0
      %p117 = por %p115, %p116
      %p118 = scmp.ne.s32.totalorder %s106, %s107
      %p119 = scmp.eq.s32.totalorder %s20, 1
      %p120 = por %p118, %p119
      %p122 = scmp.ne.s32.totalorder %s107, %s121
      %p123 = scmp.eq.s32.totalorder %s20, 0
      %p124 = por %p122, %p123
      %s126 = sadd.s32 %s125, 1
      %p129 = scmp.eq.s32.totalorder %s14, 1
      %p130 = scmp.ne.s32.totalorder %s125, %s127
      %p131 = scmp.eq.s32.totalorder %s14, 0
      %p132 = por %p130, %p131
      %p133 = scmp.ne.s32.totalorder %s125, %s127
      %p134 = scmp.eq.s32.totalorder %s19, 1
      %p135 = por %p133, %p134
      %p136 = scmp.ne.s32.totalorder %s127, %s128
      %p137 = scmp.eq.s32.totalorder %s19, 0
      %p138 = por %p136, %p137
      %p139 = scmp.ne.s32.totalorder %s127, %s128
      %p140 = scmp.eq.s32.totalorder %s20, 1
      %p141 = por %p139, %p140
      %p143 = scmp.ne.s32.totalorder %s128, %s142
      %p144 = scmp.eq.s32.totalorder %s20, 0
      %p145 = por %p143, %p144
      %s146 = ssub.s32 %s21, %s33
      %s147 = ssub.s32 %s22, %s29
      %s148 = sor.u32 %s146, %s147
      %p149 = scmp.eq.s32.totalorder %s148, 0
      %s151 = sadd.s32 %s150, 1
      %s152 = scalar_select %p149, %s150, %s151
      %p155 = pneg %p149
      %p156 = scmp.eq.s32.totalorder %s14, 1
      %p157 = por %p155, %p156
      %p158 = scmp.ne.s32.totalorder %s150, %s153
      %p159 = scmp.eq.s32.totalorder %s14, 0
      %p160 = por %p158, %p159
      %p161 = scmp.ne.s32.totalorder %s150, %s153
      %p162 = scmp.eq.s32.totalorder %s19, 1
      %p163 = por %p161, %p162
      %p164 = scmp.ne.s32.totalorder %s153, %s154
      %p165 = scmp.eq.s32.totalorder %s19, 0
      %p166 = por %p164, %p165
      %p167 = scmp.ne.s32.totalorder %s153, %s154
      %p168 = scmp.eq.s32.totalorder %s20, 1
      %p169 = por %p167, %p168
      %p171 = scmp.ne.s32.totalorder %s154, %s170
      %p172 = scmp.eq.s32.totalorder %s20, 0
      %p173 = por %p171, %p172
      %p174 = scmp.le.s32.totalorder 1, %s14
      %p175 = scmp.lt.s32.totalorder %s14, 3
      %p176 = pnand %p174, %p175
      %p177 = pneg %p176
      // Predicated region
      $region9: #{tpu_custom_call.1} parent=5 // pred_check
        _
      $region10: #{tpu_custom_call.1} parent=5 // pred_check_branch
        %179 = sbr.rel (%p176) target = $region12
      $region11: #{tpu_custom_call.1} parent=5 // pred_region
        %s180 = ssub.s32 %s14, 1
        // Predicated region
        $region13: #{tpu_custom_call.1} parent=11 // pred_check
          %p181 = pneg %p75
        $region14: #{tpu_custom_call.1} parent=11 // pred_check_branch
          %183 = sbr.rel (%p181) target = $region16
        $region15: #{tpu_custom_call.1} parent=11 // pred_region
          _
        $region16: #{tpu_custom_call.1} parent=11 // pred_fallthru
          _
        // Predicated region
        $region17: #{tpu_custom_call.1} parent=11 // pred_check
          %p184 = pneg %p96
        $region18: #{tpu_custom_call.1} parent=11 // pred_check_branch
          %186 = sbr.rel (%p184) target = $region20
        $region19: #{tpu_custom_call.1} parent=11 // pred_region
          _
        $region20: #{tpu_custom_call.1} parent=11 // pred_fallthru
          _
        // Predicated region
        $region21: #{tpu_custom_call.1} parent=11 // pred_check
          %p187 = pneg %p117
        $region22: #{tpu_custom_call.1} parent=11 // pred_check_branch
          %189 = sbr.rel (%p187) target = $region24
        $region23: #{tpu_custom_call.1} parent=11 // pred_region
          _
        $region24: #{tpu_custom_call.1} parent=11 // pred_fallthru
          _
        // Predicated region
        $region25: #{tpu_custom_call.1} parent=11 // pred_check
          %p190 = pneg %p138
        $region26: #{tpu_custom_call.1} parent=11 // pred_check_branch
          %192 = sbr.rel (%p190) target = $region28
        $region27: #{tpu_custom_call.1} parent=11 // pred_region
          _
        $region28: #{tpu_custom_call.1} parent=11 // pred_fallthru
          _
      $region12: #{tpu_custom_call.1} parent=5 // pred_fallthru
        _
      %p193 = scmp.lt.s32.totalorder %s14, 2
      // Predicated region
      $region29: #{tpu_custom_call.1} parent=5 // pred_check
        %p194 = pneg %p193
      $region30: #{tpu_custom_call.1} parent=5 // pred_check_branch
        %196 = sbr.rel (%p194) target = $region32
      $region31: #{tpu_custom_call.1} parent=5 // pred_region
        // Predicated region
        $region33: #{tpu_custom_call.1} parent=31 // pred_check
          %p197 = pneg %p48
        $region34: #{tpu_custom_call.1} parent=31 // pred_check_branch
          %199 = sbr.rel (%p197) target = $region36
        $region35: #{tpu_custom_call.1} parent=31 // pred_region
          %s200 = smul.u32 2, %s22
          %p201 = scmp.lt.s32.totalorder %s21, 1
          %s202 = scalar_select %p201, %s21, 1
          %p203 = scmp.lt.s32.totalorder %s200, 1
          %s204 = scalar_select %p203, %s200, 1
          %s205 = smul.addr %s202, 2
          %s206 = sadd.s32 %s204, %s205
          %s207 = smul.addr %s206, 4
          %s208 = scalar_lea.vmem %s0, %s207
          %s209 = smul.u32 2, %s22
        $region36: #{tpu_custom_call.1} parent=31 // pred_fallthru
          _
      $region32: #{tpu_custom_call.1} parent=5 // pred_fallthru
        _
      %p210 = scmp.le.s32.totalorder 1, %s14
      %p211 = scmp.lt.s32.totalorder %s14, 3
      %p212 = pnand %p210, %p211
      %p213 = pneg %p212
      // Predicated region
      $region37: #{tpu_custom_call.1} parent=5 // pred_check
        _
      $region38: #{tpu_custom_call.1} parent=5 // pred_check_branch
        %215 = sbr.rel (%p212) target = $region40
      $region39: #{tpu_custom_call.1} parent=5 // pred_region
        %s216 = ssub.s32 %s14, 1
        %s217 = smul.u32 2, %s24
        %p218 = scmp.lt.s32.totalorder %s23, 1
        %s219 = scalar_select %p218, %s23, 1
        %p220 = scmp.lt.s32.totalorder %s217, 1
        %s221 = scalar_select %p220, %s217, 1
        %s222 = smul.addr %s219, 2
        %s223 = sadd.s32 %s221, %s222
        %s224 = smul.addr %s223, 4
        %s225 = scalar_lea.vmem %s0, %s224
        %p226 = pneg %p54
        %p227 = pneg %p51
        %p228 = pneg %p75
        %p229 = pneg %p72
        %p230 = pneg %p96
        %p231 = pneg %p93
        %p232 = pneg %p117
        %p233 = pneg %p114
        %p234 = pneg %p138
        %p235 = pneg %p135
        %p236 = pneg %p166
        %p237 = pneg %p163
        %s238 = sand.u32 %s153, 1
        %s239 = scalar_lea.sflag [#allocation3], %s238
        %s240 = sand.u32 %s153, 1
        %s241 = smul.addr %s240, 8
        %s242 = scalar_lea.vmem [#allocation2], %s241
        %s243 = smul.u32 2, %s24
        %p244 = scmp.lt.s32.totalorder %s23, 1
        %s245 = scalar_select %p244, %s23, 1
        %p246 = scmp.lt.s32.totalorder %s243, 1
        %s247 = scalar_select %p246, %s243, 1
        %s248 = smul.addr %s245, 2
        %s249 = sadd.s32 %s247, %s248
        %s250 = smul.addr %s249, 4
        %s251 = scalar_lea.vmem %s0, %s250
        %s252 = smul.u32 2, %s24
        %s253 = smul.u32 2, %s24
        %v255 = vld [vmem:[%s251] sm:$0xff]
        %257 = vst [vmem:[#allocation1] ss:$2 sm:$0xff] %v255
        %v258 = vld.sshfl [vmem:[#allocation1] sm:$0xff pattern:$0x75316420]
        %v259 = vld.sshfl [vmem:[#allocation1 + $0x8] sm:$0xff pattern:$0x75316420]
        %v262 = vpack.c.bf16 %v258, %v258
        %v263 = vpack.c.bf16 %v259, %v259
        %v264 = vld [vmem:[%s1] sm:$0xf]
        %v265 = vld [vmem:[%s1 + $0x4] sm:$0xf]
        %v266 = vld [vmem:[%s1 + $0x8] sm:$0xf]
        %v267 = vld [vmem:[%s1 + $0xc] sm:$0xf]
        %v268 = vld [vmem:[%s2] sm:$0xff]
        %v269 = vld [vmem:[%s2 + $0x8] sm:$0xff]
        %v270 = vld [vmem:[%s2 + $0x10] sm:$0xff]
        %v271 = vld [vmem:[%s2 + $0x18] sm:$0xff]
        %273 = vset.pattern.permute.xlu0 0
        %274 = vperm.xlu0 %273, %v268
        %v275 = vpop.permute.xlu0 %274
        %278 = vset.pattern.permute.xlu0 0
        %279 = vperm.xlu0 %278, %v269
        %v280 = vpop.permute.xlu0 %279
        %283 = vset.pattern.permute.xlu0 0
        %284 = vperm.xlu0 %283, %v270
        %v285 = vpop.permute.xlu0 %284
        %288 = vset.pattern.permute.xlu0 0
        %289 = vperm.xlu0 %288, %v271
        %v290 = vpop.permute.xlu0 %289
        %v296 = vunpack.c.l.b16 %v264
        %v297 = vunpack.c.l.b16 %v265
        %v298 = vunpack.c.l.b16 %v266
        %v299 = vunpack.c.l.b16 %v267
        %v300 = vpack.c.b16 %v297, %v296
        %v301 = vpack.c.b16 %v299, %v298
        %vm302 = vcmask 31744
        %v304 = vsel %vm302, %v300, 0
        %v307 = vsel %vm302, %v301, 0
        %vm309 = vcmask 1041408
        %v311 = vsel %vm309, %v262, 0
        %v314 = vsel %vm309, %v263, 0
        %316 = vmatpush.bf16.msra.mxu0 0
        %317 = vmatpush.bf16.msra.mxu0 0
        %318 = vmatpush.bf16.msra.mxu0 0
        %319 = vmatpush.bf16.msra.mxu0 0
        %320 = vmatpush.bf16.msra.mxu0 0
        %321 = vmatpush.bf16.msra.mxu0 0
        %322 = vmatpush.bf16.msra.mxu0 0
        %323 = vmatpush.bf16.msra.mxu0 %v311
        %324 = vmatmul.bf16.gmra.mxu0 %v304
        %v325 = vpop.f32.mrf.mxu0
        %v326 = vadd.f32 %v275, %v325
        %v327 = vpop.f32.mrf.mxu0
        %v328 = vadd.f32 %v280, %v327
        %329 = vmatmul.bf16.gmra.mxu0 %v307
        %v330 = vpop.f32.mrf.mxu0
        %v331 = vadd.f32 %v285, %v330
        %v332 = vpop.f32.mrf.mxu0
        %v333 = vadd.f32 %v290, %v332
        %334 = vdwg.mxu0
        %335 = vmatpush.bf16.msra.mxu0 0
        %336 = vmatpush.bf16.msra.mxu0 0
        %337 = vmatpush.bf16.msra.mxu0 0
        %338 = vmatpush.bf16.msra.mxu0 0
        %339 = vmatpush.bf16.msra.mxu0 0
        %340 = vmatpush.bf16.msra.mxu0 0
        %341 = vmatpush.bf16.msra.mxu0 0
        %342 = vmatpush.bf16.msra.mxu0 %v314
        %343 = vmatmul.bf16.gmra.mxu0 %v304
        %v344 = vpop.f32.mrf.mxu0
        %v345 = vadd.f32 %v275, %v344
        %v346 = vpop.f32.mrf.mxu0
        %v347 = vadd.f32 %v280, %v346
        %348 = vmatmul.bf16.gmra.mxu0 %v307
        %v349 = vpop.f32.mrf.mxu0
        %v350 = vadd.f32 %v285, %v349
        %v351 = vpop.f32.mrf.mxu0
        %v352 = vadd.f32 %v290, %v351
        %353 = vdwg.mxu0
        %v354 = vmax.f32 %v326, 0.0
        %v355 = vmax.f32 %v345, 0.0
        %v356 = vmax.f32 %v328, 0.0
        %v357 = vmax.f32 %v347, 0.0
        %v358 = vmax.f32 %v331, 0.0
        %v359 = vmax.f32 %v350, 0.0
        %v360 = vmax.f32 %v333, 0.0
        %v361 = vmax.f32 %v352, 0.0
        %v362 = vld [vmem:[%s3] sm:$0x3]
        %v363 = vpack.c.bf16 %v356, %v354
        %v364 = vpack.c.bf16 %v357, %v355
        %v365 = vpack.c.bf16 %v360, %v358
        %v366 = vpack.c.bf16 %v361, %v359
        %v367 = vld [vmem:[%s4] sm:$0xf]
        %369 = vset.pattern.permute.xlu0 0
        %370 = vperm.xlu0 %369, %v367
        %v371 = vpop.permute.xlu0 %370
        %vm373 = vcmask 261120
        %v375 = vsel %vm373, %v362, 0
        %377 = vmatpush.bf16.msra.mxu0 0
        %378 = vmatpush.bf16.msra.mxu0 0
        %379 = vmatpush.bf16.msra.mxu0 0
        %380 = vmatpush.bf16.msra.mxu0 0
        %381 = vmatpush.bf16.msra.mxu0 0
        %382 = vmatpush.bf16.msra.mxu0 0
        %383 = vmatpush.bf16.msra.mxu0 %v365
        %384 = vmatpush.bf16.msra.mxu0 %v363
        %385 = vmatmul.bf16.gmra.mxu0 %v375
        %v386 = vpop.f32.mrf.mxu0
        %v387 = vadd.f32 %v371, %v386
        %v388 = vpop.f32.mrf.mxu0
        %389 = vdwg.mxu0
        %390 = vmatpush.bf16.msra.mxu0 0
        %391 = vmatpush.bf16.msra.mxu0 0
        %392 = vmatpush.bf16.msra.mxu0 0
        %393 = vmatpush.bf16.msra.mxu0 0
        %394 = vmatpush.bf16.msra.mxu0 0
        %395 = vmatpush.bf16.msra.mxu0 0
        %396 = vmatpush.bf16.msra.mxu0 %v366
        %397 = vmatpush.bf16.msra.mxu0 %v364
        %398 = vmatmul.bf16.gmra.mxu0 %v375
        %v399 = vpop.f32.mrf.mxu0
        %v400 = vadd.f32 %v371, %v399
        %v401 = vpop.f32.mrf.mxu0
        %402 = vdwg.mxu0
        %v405 = vrot.slane %v400, 4
        %vm406 = vcmask 1043456
        %v407 = vsel %vm406, %v387, %v405
        %409 = vst [vmem:[%s242] sm:$0xff] %v407
        %s410 = sand.u32 %s153, 1
        %s411 = scalar_lea.sflag [#allocation3], %s410
        %s412 = sand.u32 %s153, 1
        %s413 = smul.addr %s412, 8
        %s414 = scalar_lea.vmem [#allocation2], %s413
        // Predicated region
        $region41: #{tpu_custom_call.1} parent=39 // pred_check
          %p415 = pneg %p163
        $region42: #{tpu_custom_call.1} parent=39 // pred_check_branch
          %417 = sbr.rel (%p415) target = $region44
        $region43: #{tpu_custom_call.1} parent=39 // pred_region
          %s418 = smul.u32 2, %s24
          %420 = vsyncadd %s411, 0
          %s421 = smul.addr %s23, 2
          %s422 = sadd.s32 %s418, %s421
          %s423 = smul.addr %s422, 4
          %s424 = scalar_lea.hbm %s5, %s423
          %s426 = sshll.u32 %s414, 4
          %s427 = int_to_ptr.vmem [resolvable:$true] %s426
          %s428 = sshll.u32 %s424, 4
          %s429 = int_to_ptr.hbm [resolvable:$true] %s428
          %431 = dma.vmem_to_hbm [thread:$0]  %s427, 128, %s429, %s411
        $region44: #{tpu_custom_call.1} parent=39 // pred_fallthru
          _
      $region40: #{tpu_custom_call.1} parent=5 // pred_fallthru
        _
      %p432 = scmp.le.s32.totalorder 2, %s14
      // Predicated region
      $region45: #{tpu_custom_call.1} parent=5 // pred_check
        %p433 = pneg %p432
      $region46: #{tpu_custom_call.1} parent=5 // pred_check_branch
        %435 = sbr.rel (%p433) target = $region48
      $region47: #{tpu_custom_call.1} parent=5 // pred_region
        %s436 = ssub.s32 %s14, 2
        // Predicated region
        $region49: #{tpu_custom_call.1} parent=47 // pred_check
          %p437 = pneg %p169
        $region50: #{tpu_custom_call.1} parent=47 // pred_check_branch
          %439 = sbr.rel (%p437) target = $region52
        $region51: #{tpu_custom_call.1} parent=47 // pred_region
          %s440 = sand.u32 %s154, 1
          %s441 = scalar_lea.sflag [#allocation3], %s440
          %s442 = sand.u32 %s154, 1
          %s443 = smul.addr %s442, 8
          %s444 = scalar_lea.vmem [#allocation2], %s443
          %446 = dma.done %s441, 128
        $region52: #{tpu_custom_call.1} parent=47 // pred_fallthru
          _
      $region48: #{tpu_custom_call.1} parent=5 // pred_fallthru
        _
    $region6: #{tpu_custom_call.1} parent=1 // loop_footer
      %s18 = sadd.s32 1, %s14
    $region7: #{tpu_custom_call.1} parent=1 // loop_footer_branch
      %13 = sbr.rel target = $region3
    $region8: #{tpu_custom_call.1} parent=1 // loop_exit
      _
    %447 = vsyncpa [#allocation3], 1
    %s448 = scalar_lea.sflag [#allocation3], 1
    %449 = vsyncpa %s448, 1

</llo_original>
